<compile_context>
chip_gen: v5e
topology: v5e:2x2
jax: 0.10.0
libtpu: 0.0.40
codegen_flags: <defaults>
</compile_context>

<pallas_src>
import functools

import jax
import jax.numpy as jnp
from jax.experimental import pallas as pl
from jax.experimental.pallas import tpu as pltpu


def _round_up(n: int, m: int) -> int:
    return ((n + m - 1) // m) * m


# ----------------------------------------------------------------------------
# Kernel
# ----------------------------------------------------------------------------
def _qnet_kernel(x_ref, p1_ref, p2_ref, out_ref, *, in_pad: int, hid_lane: int):
    # p1 layout ([in_pad + 8, hid_lane], zero padded):
    #   rows [0, in_pad)    : W1
    #   row  in_pad         : b1
    # p2 layout ([hid_lane + 8, out8], zero padded):
    #   rows [0, hid_lane)  : W2
    #   row  hid_lane       : b2
    w1 = p1_ref[0:in_pad, :]
    b1 = p1_ref[in_pad:in_pad + 1, :]
    w2 = p2_ref[0:hid_lane, :]
    b2 = p2_ref[hid_lane:hid_lane + 1, :]

    # Hidden layer: x @ W1 + b1, ReLU (MXU matmul, f32 accumulation).
    h = jnp.dot(x_ref[...], w1, preferred_element_type=jnp.float32) + b1
    h = jnp.maximum(h, 0.0)
    # Output layer: h @ W2 + b2 -> narrow [bt, out8] result (padded hidden
    # columns are exactly zero and padded W2 rows/cols are zero, so the first
    # OUT columns match the unpadded math).
    o = jnp.dot(h, w2, preferred_element_type=jnp.float32) + b2
    out_ref[...] = o.astype(out_ref.dtype)


# ----------------------------------------------------------------------------
# One-time parameter packing (do this at model init, reuse across calls)
# ----------------------------------------------------------------------------
def pack_qnet_params(w1, b1, w2, b2):
    """Pack weights/biases into two padded f32 buffers consumed by the kernel.

    w1: [IN, HID], b1: [HID], w2: [HID, OUT], b2: [OUT]
    returns (p1 [in_pad+8, hid_lane], p2 [hid_lane+8, out8])
    """
    IN, HID = w1.shape
    OUT = w2.shape[1]
    in_pad = max(_round_up(IN, 8), 8)
    hid_lane = max(_round_up(HID, 128), 128)
    out8 = max(_round_up(OUT, 8), 8)

    p1 = jnp.zeros((in_pad + 8, hid_lane), jnp.float32)
    p1 = p1.at[:IN, :HID].set(w1.astype(jnp.float32))
    p1 = p1.at[in_pad, :HID].set(b1.astype(jnp.float32))

    p2 = jnp.zeros((hid_lane + 8, out8), jnp.float32)
    p2 = p2.at[:HID, :OUT].set(w2.astype(jnp.float32))
    p2 = p2.at[hid_lane, :OUT].set(b2.astype(jnp.float32))
    return p1, p2


# ----------------------------------------------------------------------------
# Forward (hot path): pad x, run fused kernel, slice result
# ----------------------------------------------------------------------------
def linear_qnet_forward(x, p1, p2, out_size: int, *, block_b: int = 8192):
    """relu(x @ W1 + b1) @ W2 + b2 using pre-packed params from pack_qnet_params."""
    B, IN = x.shape
    in_pad = p1.shape[0] - 8
    hid_lane = p1.shape[1]
    out8 = p2.shape[1]
    assert IN <= in_pad and out_size <= out8

    # Batch tile: multiple of 8 (BlockSpec constraint), capped by block_b
    # (VMEM-safe on v7x's 64 MiB / 32 MiB default scoped VMEM).
    b8 = max(_round_up(B, 8), 8)
    bt = min(_round_up(block_b, 8), b8)
    # v7x megacore: if a mid/large batch would collapse to a single grid step,
    # split it so both TensorCores get work under "parallel" semantics.
    if b8 >= 512 and b8 <= bt:
        bt = _round_up(pl.cdiv(b8, 2), 8)
    b_pad = _round_up(b8, bt)

    # Single pad op on the hot path (no zeros + dynamic-update-slice chains).
    x_pad = jnp.pad(x.astype(jnp.float32), ((0, b_pad - B), (0, in_pad - IN)))

    kernel = functools.partial(_qnet_kernel, in_pad=in_pad, hid_lane=hid_lane)

    out_pad = pl.pallas_call(
        kernel,
        out_shape=jax.ShapeDtypeStruct((b_pad, out8), jnp.float32),
        grid=(b_pad // bt,),
        in_specs=[
            pl.BlockSpec((bt, in_pad), lambda i: (i, 0)),          # batch tile of x
            pl.BlockSpec((in_pad + 8, hid_lane), lambda i: (0, 0)),  # W1/b1 (resident)
            pl.BlockSpec((hid_lane + 8, out8), lambda i: (0, 0)),    # W2/b2 (resident)
        ],
        out_specs=pl.BlockSpec((bt, out8), lambda i: (i, 0)),       # narrow output
        compiler_params=pltpu.CompilerParams(
            dimension_semantics=("parallel",)),                     # megacore on v7x
    )(x_pad, p1, p2)

    return out_pad[:B, :out_size]


def _reference_forward(x, w1, b1, w2, b2):
    h = jnp.maximum(x @ w1 + b1, 0.0)
    return h @ w2 + b2


if __name__ == "__main__":
    # Small shapes consistent with Linear_Qnet(input_size, hidden_size, output_size)
    B, IN, HID, OUT = 8, 16, 32, 4

    key = jax.random.PRNGKey(0)
    kx, kw1, kb1, kw2, kb2 = jax.random.split(key, 5)

    x = jax.random.normal(kx, (B, IN), dtype=jnp.float32)
    # PyTorch Linear stores weight as [out, in]; we keep the transpose [in, out]
    # so the kernel computes x @ W directly.
    w1 = jax.random.normal(kw1, (IN, HID), dtype=jnp.float32) * 0.1
    b1 = jax.random.normal(kb1, (HID,), dtype=jnp.float32) * 0.1
    w2 = jax.random.normal(kw2, (HID, OUT), dtype=jnp.float32) * 0.1
    b2 = jax.random.normal(kb2, (OUT,), dtype=jnp.float32) * 0.1

    # Pack once (model init); forward reuses the packed buffers.
    p1, p2 = pack_qnet_params(w1, b1, w2, b2)
    p1, p2 = jax.block_until_ready((p1, p2))

    out = linear_qnet_forward(x, p1, p2, OUT)
    out = jax.block_until_ready(out)

    ref = _reference_forward(x, w1, b1, w2, b2)
    assert out.shape == (B, OUT)
    assert jnp.allclose(out, ref, atol=1e-5, rtol=1e-5), "mismatch vs reference"

    print("KERNEL_OK")
</pallas_src>

<mosaic_0001>
module attributes {stable_mosaic.version = 11 : i64} {
  func.func @_qnet_kernel(%arg0: i32, %arg1: memref<8x16xf32, #tpu.memory_space<vmem>>, %arg2: memref<24x128xf32, #tpu.memory_space<vmem>>, %arg3: memref<136x8xf32, #tpu.memory_space<vmem>>, %arg4: memref<8x8xf32, #tpu.memory_space<vmem>>) attributes {dimension_semantics = [#tpu.dimension_semantics<parallel>], iteration_bounds = array<i64: 1>, scalar_prefetch = 0 : i64, scratch_operands = 0 : i64, tpu.core_type = #tpu.core_type<tc>, window_params = [{transform_indices = @transform_0, window_bounds = array<i64: 8, 16>}, {pipeline_mode = #tpu.pipeline_mode<synchronous>, transform_indices = @transform_1, window_bounds = array<i64: 24, 128>}, {pipeline_mode = #tpu.pipeline_mode<synchronous>, transform_indices = @transform_2, window_bounds = array<i64: 136, 8>}, {transform_indices = @transform_3, window_bounds = array<i64: 8, 8>}]} {
    %c0 = arith.constant 0 : index
    %c0_0 = arith.constant 0 : index
    %0 = vector.load %arg2[%c0, %c0_0] : memref<24x128xf32, #tpu.memory_space<vmem>>, vector<16x128xf32>
    %c16 = arith.constant 16 : index
    %c0_1 = arith.constant 0 : index
    %1 = vector.load %arg2[%c16, %c0_1] : memref<24x128xf32, #tpu.memory_space<vmem>>, vector<1x128xf32>
    %c0_2 = arith.constant 0 : index
    %c0_3 = arith.constant 0 : index
    %2 = vector.load %arg3[%c0_2, %c0_3] : memref<136x8xf32, #tpu.memory_space<vmem>>, vector<128x8xf32>
    %c128 = arith.constant 128 : index
    %c0_4 = arith.constant 0 : index
    %3 = vector.load %arg3[%c128, %c0_4] : memref<136x8xf32, #tpu.memory_space<vmem>>, vector<1x8xf32>
    %c0_5 = arith.constant 0 : index
    %c0_6 = arith.constant 0 : index
    %4 = vector.load %arg1[%c0_5, %c0_6] : memref<8x16xf32, #tpu.memory_space<vmem>>, vector<8x16xf32>
    %cst = arith.constant dense<0.000000e+00> : vector<8x128xf32>
    %5 = tpu.matmul %4, %0, %cst {dimension_numbers = #tpu.dot_dimension_numbers<[1], [0], [0], [1], [0, 0, 1, 1], [], []>} : vector<8x16xf32>, vector<16x128xf32>, vector<8x128xf32> -> vector<8x128xf32>
    %6 = vector.broadcast %1 : vector<1x128xf32> to vector<8x128xf32>
    %7 = arith.addf %5, %6 : vector<8x128xf32>
    %cst_7 = arith.constant 0.000000e+00 : f32
    %8 = vector.broadcast %cst_7 : f32 to vector<8x128xf32>
    %9 = arith.maximumf %7, %8 : vector<8x128xf32>
    %cst_8 = arith.constant dense<0.000000e+00> : vector<8x8xf32>
    %10 = tpu.matmul %9, %2, %cst_8 {dimension_numbers = #tpu.dot_dimension_numbers<[1], [0], [0], [1], [0, 0, 1, 1], [], []>} : vector<8x128xf32>, vector<128x8xf32>, vector<8x8xf32> -> vector<8x8xf32>
    %11 = vector.broadcast %3 : vector<1x8xf32> to vector<8x8xf32>
    %12 = arith.addf %10, %11 : vector<8x8xf32>
    %c0_9 = arith.constant 0 : index
    %c0_10 = arith.constant 0 : index
    %13 = vector.load %arg4[%c0_9, %c0_10] : memref<8x8xf32, #tpu.memory_space<vmem>>, vector<8x8xf32>
    tpu.vector_store %arg4[%c0_9, %c0_10], %12 {strides = array<i32>} : memref<8x8xf32, #tpu.memory_space<vmem>>, vector<8x8xf32>,
    return
  }
  func.func @transform_0(%arg0: i32) -> (i32, i32) {
    %c0_i32 = arith.constant 0 : i32
    %c0_i32_0 = arith.constant 0 : i32
    return %arg0, %c0_i32 : i32, i32
  }
  func.func @transform_1(%arg0: i32) -> (i32, i32) {
    %c0_i32 = arith.constant 0 : i32
    %c0_i32_0 = arith.constant 0 : i32
    %c0_i32_1 = arith.constant 0 : i32
    return %c0_i32, %c0_i32_0 : i32, i32
  }
  func.func @transform_2(%arg0: i32) -> (i32, i32) {
    %c0_i32 = arith.constant 0 : i32
    %c0_i32_0 = arith.constant 0 : i32
    %c0_i32_1 = arith.constant 0 : i32
    return %c0_i32, %c0_i32_0 : i32, i32
  }
  func.func @transform_3(%arg0: i32) -> (i32, i32) {
    %c0_i32 = arith.constant 0 : i32
    %c0_i32_0 = arith.constant 0 : i32
    return %arg0, %c0_i32 : i32, i32
  }
}

</mosaic_0001>

<llo_original>
// kernel: tpu_custom_call.1
$region0: #{tpu_custom_call.1}
  #allocation0 [shape = 'u32[]', space=smem, size = 0x4, offset = 0x4, fixed_abs, tag = 'smem constant byte address 0x4 - core index']
  #allocation1 [shape = 'u32[72,128]{1,0:T(1,128)}', space=vmem, size = 0x9000, scoped, tag = 'internal scratch']
  %s0 = inlined_call_operand.vmem [shape: f32[8,16], index: 0, kind: input, shape index: {}]
  %s1 = inlined_call_operand.vmem [shape: f32[24,128], index: 1, kind: input, shape index: {}]
  %s2 = inlined_call_operand.vmem [shape: f32[136,8], index: 2, kind: input, shape index: {}]
  %s3 = inlined_call_operand.hbm [shape: f32[8,8], index: 3, kind: output, shape index: {}]
  %s4 = sld [smem:[#allocation0]]
  $region22: #{tpu_custom_call.1} parent=0
    _
  %s6 = ssub.s32 1, %s4
  %s7 = scalar_select 0, %s6, %s4
  $region1: #{tpu_custom_call.1} parent=0
    #allocation2 [shape = 'u8[4096]{0}', space=vmem, size = 0x1000, scoped, tag = 'output window, operand 0, single buffered']
    #allocation3 [shape = 's32[1]{0}', space=sflag, size = 0x4, scoped, tag = 'scoped memory for tpu_custom_call.1']
    %8 = vsyncpa [#allocation3], 0
    // Predicated region
    $region2: #{tpu_custom_call.1} parent=1 // pred_check
      _
    $region3: #{tpu_custom_call.1} parent=1 // pred_check_branch
      %10 = sbr.rel (0) target = $region5
    $region4: #{tpu_custom_call.1} parent=1 // pred_region
      _
    $region5: #{tpu_custom_call.1} parent=1 // pred_fallthru
      _
    // Predicated region
    $region6: #{tpu_custom_call.1} parent=1 // pred_check
      _
    $region7: #{tpu_custom_call.1} parent=1 // pred_check_branch
      %12 = sbr.rel (0) target = $region9
    $region8: #{tpu_custom_call.1} parent=1 // pred_region
      _
    $region9: #{tpu_custom_call.1} parent=1 // pred_fallthru
      _
    // Predicated region
    $region10: #{tpu_custom_call.1} parent=1 // pred_check
      _
    $region11: #{tpu_custom_call.1} parent=1 // pred_check_branch
      %14 = sbr.rel (0) target = $region13
    $region12: #{tpu_custom_call.1} parent=1 // pred_region
      _
    $region13: #{tpu_custom_call.1} parent=1 // pred_fallthru
      _
    %v15 = vld [vmem:[%s1] sm:$0xff]
    %v16 = vld [vmem:[%s1 + $0x8] sm:$0xff]
    %v17 = vld [vmem:[%s1 + $0x10] sm:$0x1]
    %v18 = vld [vmem:[%s2] sm:$0xff]
    %v19 = vld [vmem:[%s2 + $0x8] sm:$0xff]
    %v20 = vld [vmem:[%s2 + $0x10] sm:$0xff]
    %v21 = vld [vmem:[%s2 + $0x18] sm:$0xff]
    %v22 = vld [vmem:[%s2 + $0x20] sm:$0xff]
    %v23 = vld [vmem:[%s2 + $0x28] sm:$0xff]
    %v24 = vld [vmem:[%s2 + $0x30] sm:$0xff]
    %v25 = vld [vmem:[%s2 + $0x38] sm:$0xff]
    %v26 = vld [vmem:[%s2 + $0x40] sm:$0xff]
    %v27 = vld [vmem:[%s2 + $0x48] sm:$0xff]
    %v28 = vld [vmem:[%s2 + $0x50] sm:$0xff]
    %v29 = vld [vmem:[%s2 + $0x58] sm:$0xff]
    %v30 = vld [vmem:[%s2 + $0x60] sm:$0xff]
    %v31 = vld [vmem:[%s2 + $0x68] sm:$0xff]
    %v32 = vld [vmem:[%s2 + $0x70] sm:$0xff]
    %v33 = vld [vmem:[%s2 + $0x78] sm:$0xff]
    %v34 = vld [vmem:[%s2 + $0x80] sm:$0x1]
    %v35 = vld [vmem:[%s0] sm:$0xff]
    %v36 = vperm.slane %v17, 0
    %vm37 = vcmask 130048
    %v39 = vsel %vm37, %v35, 0
    %41 = vmatpush.msra.mxu0 0.0
    %42 = vmatpush.msra.mxu0 0.0
    %43 = vmatpush.msra.mxu0 0.0
    %44 = vmatpush.msra.mxu0 0.0
    %45 = vmatpush.msra.mxu0 0.0
    %46 = vmatpush.msra.mxu0 0.0
    %47 = vmatpush.msra.mxu0 0.0
    %48 = vmatpush.msra.mxu0 0.0
    %49 = vmatpush.msra.mxu0 0.0
    %50 = vmatpush.msra.mxu0 0.0
    %51 = vmatpush.msra.mxu0 0.0
    %52 = vmatpush.msra.mxu0 0.0
    %53 = vmatpush.msra.mxu0 0.0
    %54 = vmatpush.msra.mxu0 0.0
    %55 = vmatpush.msra.mxu0 %v16
    %56 = vmatpush.msra.mxu0 %v15
    %57 = vmatmul.f32.gmra.mxu0 %v39
    %v58 = vpop.f32.mrf.mxu0
    %v59 = vadd.f32 %v36, %v58
    %60 = vdwg.mxu0
    %v61 = vmax.f32 %v59, 0.0
    %v62 = vperm.slane %v34, 0
    %63 = vmatpush.msra.mxu0 %v33
    %64 = vmatpush.msra.mxu0 %v32
    %65 = vmatpush.msra.mxu0 %v31
    %66 = vmatpush.msra.mxu0 %v30
    %67 = vmatpush.msra.mxu0 %v29
    %68 = vmatpush.msra.mxu0 %v28
    %69 = vmatpush.msra.mxu0 %v27
    %70 = vmatpush.msra.mxu0 %v26
    %71 = vmatpush.msra.mxu0 %v25
    %72 = vmatpush.msra.mxu0 %v24
    %73 = vmatpush.msra.mxu0 %v23
    %74 = vmatpush.msra.mxu0 %v22
    %75 = vmatpush.msra.mxu0 %v21
    %76 = vmatpush.msra.mxu0 %v20
    %77 = vmatpush.msra.mxu0 %v19
    %78 = vmatpush.msra.mxu0 %v18
    %79 = vmatmul.f32.gmra.mxu0 %v61
    %v80 = vpop.f32.mrf.mxu0
    %v81 = vadd.f32 %v62, %v80
    %82 = vdwg.mxu0
    %vm83 = vcmask 64512
    %84 = vst.msk [vmem:[#allocation2] sm:$0xff] %vm83, %v81
    // Predicated region
    $region14: #{tpu_custom_call.1} parent=1 // pred_check
      _
    $region15: #{tpu_custom_call.1} parent=1 // pred_check_branch
      %86 = sbr.rel (0) target = $region17
    $region16: #{tpu_custom_call.1} parent=1 // pred_region
      %88 = vsyncadd [#allocation3], 0
      %s90 = sshll.u32 [#allocation2], 4
      %s91 = int_to_ptr.vmem [resolvable:$true] %s90
      %s92 = sshll.u32 %s3, 4
      %s93 = int_to_ptr.hbm [resolvable:$true] %s92
      %95 = dma.vmem_to_hbm [thread:$0]  %s91, 128, %s93, [#allocation3]
    $region17: #{tpu_custom_call.1} parent=1 // pred_fallthru
      _
    // Predicated region
    $region18: #{tpu_custom_call.1} parent=1 // pred_check
      _
    $region19: #{tpu_custom_call.1} parent=1 // pred_check_branch
      %97 = sbr.rel (0) target = $region21
    $region20: #{tpu_custom_call.1} parent=1 // pred_region
      %99 = dma.done [#allocation3], 128
    $region21: #{tpu_custom_call.1} parent=1 // pred_fallthru
      _
    %100 = vsyncpa [#allocation3], 1

</llo_original>
